<compile_context>
chip_gen: v5e
topology: v5e:2x2
jax: 0.10.0
libtpu: 0.0.40
codegen_flags: <defaults>
</compile_context>

<pallas_src>
import jax
import jax.numpy as jnp
from jax.experimental import pallas as pl
from jax.experimental.pallas import tpu as pltpu  # noqa: F401  (kept for TPU-specific tuning hooks)


# ----------------------------- Pallas kernel ------------------------------- #

def _dqn_fused_kernel(x_ref, w1_ref, b1_ref, w2_ref, b2_ref,
                      hw1_ref, hb1_ref, hw2_ref, hb2_ref, out_ref):
    """Fused forward:
       trunk : Linear(4S->8S) -> ReLU -> Linear(8S->4S)
       heads : Linear(4S->Q*2A) -> ReLU -> block-diag Linear(Q*2A -> Q*A_pad)
    Everything stays in vregs; single unmasked store of a lane-dense slab.
    """
    x = x_ref[...]                                                  # (Bp, F4)
    h = jnp.dot(x, w1_ref[...], preferred_element_type=jnp.float32) + b1_ref[...]
    h = jnp.maximum(h, 0.0)                                         # (Bp, F8)
    s = jnp.dot(h, w2_ref[...], preferred_element_type=jnp.float32) + b2_ref[...]
    # Heads (all qubits at once; ReLU is elementwise so concatenation is exact).
    g = jnp.dot(s, hw1_ref[...], preferred_element_type=jnp.float32) + hb1_ref[...]
    g = jnp.maximum(g, 0.0)                                         # (Bp, Q*A2)
    y = jnp.dot(g, hw2_ref[...], preferred_element_type=jnp.float32) + hb2_ref[...]
    out_ref[...] = y.astype(out_ref.dtype)                          # (Bp, QA_pad)


# --------------------------- Weight packing -------------------------------- #

def pack_params(params, lane_multiple=128):
    """Repack per-qubit head weights so the head stage is grid-free.

    hw1 (Q, F4, A2)  -> (F4, Q*A2)          lane-concatenated
    hw2 (Q, A2, A)   -> (Q*A2, QA_pad)      block-diagonal, lane-padded to 128
    Biases are flattened / lane-padded to match.
    """
    (w1, b1, w2, b2, hw1, hb1, hw2, hb2) = params
    Q, F4, A2 = hw1.shape
    A = hw2.shape[2]
    QA = Q * A
    QA_pad = max(lane_multiple, ((QA + lane_multiple - 1) // lane_multiple) * lane_multiple)

    hw1_p = jnp.transpose(hw1, (1, 0, 2)).reshape(F4, Q * A2)
    hb1_p = hb1.reshape(1, Q * A2)

    hw2_bd = jnp.zeros((Q * A2, QA_pad), jnp.float32)
    for q in range(Q):
        hw2_bd = hw2_bd.at[q * A2:(q + 1) * A2, q * A:(q + 1) * A].set(hw2[q])
    hb2_p = jnp.pad(hb2.reshape(1, QA), ((0, 0), (0, QA_pad - QA)))

    packed = (w1, b1, w2, b2, hw1_p, hb1_p, hw2_bd, hb2_p)
    meta = dict(Q=Q, A=A, QA=QA, QA_pad=QA_pad)
    return packed, meta


# ------------------------------ Wrapper ------------------------------------ #

def dqn_forward_packed(state, packed, meta):
    """Single fused pallas_call; layout plumbing (pad/reshape) in the wrapper."""
    B, _ = state.shape
    Bp = max(8, ((B + 7) // 8) * 8)              # pad batch to a sublane multiple
    x = jnp.pad(state, ((0, Bp - B), (0, 0)))

    y = pl.pallas_call(
        _dqn_fused_kernel,
        out_shape=jax.ShapeDtypeStruct((Bp, meta["QA_pad"]), jnp.float32),
    )(x, *packed)

    # Lane-dense slab -> (Q, B, A) stacked output (free layout plumbing).
    y = y[:B, :meta["QA"]].reshape(B, meta["Q"], meta["A"])
    return jnp.transpose(y, (1, 0, 2))


def dqn_forward(state, params):
    packed, meta = pack_params(params)
    return dqn_forward_packed(state, packed, meta)


# --------------------------- Parameter init -------------------------------- #

def init_params(key, state_sz, action_sz, num_of_qubits):
    """Deterministic init mimicking nn.Linear's U(-1/sqrt(fan_in), +...).

    Weights stored pre-transposed as (in_features, out_features); heads keep a
    per-qubit leading dim so the reference forward mirrors the PyTorch module.
    """
    F4, F8 = 4 * state_sz, 8 * state_sz
    A, A2 = action_sz, 2 * action_sz
    Q = num_of_qubits

    def uni(k, shape, fan_in):
        bound = 1.0 / jnp.sqrt(jnp.float32(fan_in))
        return jax.random.uniform(k, shape, jnp.float32, -bound, bound)

    ks = jax.random.split(key, 8)
    w1 = uni(ks[0], (F4, F8), F4)
    b1 = uni(ks[1], (1, F8), F4)
    w2 = uni(ks[2], (F8, F4), F8)
    b2 = uni(ks[3], (1, F4), F8)
    hw1 = uni(ks[4], (Q, F4, A2), F4)
    hb1 = uni(ks[5], (Q, 1, A2), F4)
    hw2 = uni(ks[6], (Q, A2, A), A2)
    hb2 = uni(ks[7], (Q, 1, A), A2)
    return (w1, b1, w2, b2, hw1, hb1, hw2, hb2)


def reference_forward(state, params):
    """Plain-JAX reference reproducing the PyTorch forward semantics."""
    (w1, b1, w2, b2, hw1, hb1, hw2, hb2) = params
    s_new = jnp.maximum(state @ w1 + b1, 0.0) @ w2 + b2
    h = jnp.maximum(jnp.einsum("bf,qfa->qba", s_new, hw1) + hb1, 0.0)
    return jnp.einsum("qba,qac->qbc", h, hw2) + hb2


# ------------------------------- Main --------------------------------------- #

if __name__ == "__main__":
    state_sz = 8        # state feature base size  -> input dim 4*8 = 32
    action_sz = 4       # per-qubit action dim
    num_of_qubits = 3
    batch = 2

    key = jax.random.PRNGKey(0)
    k_param, k_state = jax.random.split(key)
    params = init_params(k_param, state_sz, action_sz, num_of_qubits)
    state = jax.random.normal(k_state, (batch, 4 * state_sz), jnp.float32)

    # Pack head weights once (outside the per-call path).
    packed, meta = pack_params(params)

    q_values = jax.block_until_ready(dqn_forward_packed(state, packed, meta))
    assert q_values.shape == (num_of_qubits, batch, action_sz), q_values.shape

    ref = reference_forward(state, params)
    assert jnp.allclose(q_values, ref, atol=1e-5, rtol=1e-5), (
        "Pallas output does not match reference")

    print("KERNEL_OK")
</pallas_src>

<mosaic_0001>
module attributes {stable_mosaic.version = 11 : i64} {
  func.func @_dqn_fused_kernel(%arg0: memref<8x32xf32, #tpu.memory_space<vmem>>, %arg1: memref<32x64xf32, #tpu.memory_space<vmem>>, %arg2: memref<1x64xf32, #tpu.memory_space<vmem>>, %arg3: memref<64x32xf32, #tpu.memory_space<vmem>>, %arg4: memref<1x32xf32, #tpu.memory_space<vmem>>, %arg5: memref<32x24xf32, #tpu.memory_space<vmem>>, %arg6: memref<1x24xf32, #tpu.memory_space<vmem>>, %arg7: memref<24x128xf32, #tpu.memory_space<vmem>>, %arg8: memref<1x128xf32, #tpu.memory_space<vmem>>, %arg9: memref<8x128xf32, #tpu.memory_space<vmem>>) attributes {dimension_semantics = [], scalar_prefetch = 0 : i64, scratch_operands = 0 : i64, tpu.core_type = #tpu.core_type<tc>} {
    %c0 = arith.constant 0 : index
    %c0_0 = arith.constant 0 : index
    %0 = vector.load %arg0[%c0, %c0_0] : memref<8x32xf32, #tpu.memory_space<vmem>>, vector<8x32xf32>
    %c0_1 = arith.constant 0 : index
    %c0_2 = arith.constant 0 : index
    %1 = vector.load %arg1[%c0_1, %c0_2] : memref<32x64xf32, #tpu.memory_space<vmem>>, vector<32x64xf32>
    %cst = arith.constant dense<0.000000e+00> : vector<8x64xf32>
    %2 = tpu.matmul %0, %1, %cst {dimension_numbers = #tpu.dot_dimension_numbers<[1], [0], [0], [1], [0, 0, 1, 1], [], []>} : vector<8x32xf32>, vector<32x64xf32>, vector<8x64xf32> -> vector<8x64xf32>
    %c0_3 = arith.constant 0 : index
    %c0_4 = arith.constant 0 : index
    %3 = vector.load %arg2[%c0_3, %c0_4] : memref<1x64xf32, #tpu.memory_space<vmem>>, vector<1x64xf32>
    %4 = vector.broadcast %3 : vector<1x64xf32> to vector<8x64xf32>
    %5 = arith.addf %2, %4 : vector<8x64xf32>
    %cst_5 = arith.constant 0.000000e+00 : f32
    %6 = vector.broadcast %cst_5 : f32 to vector<8x64xf32>
    %7 = arith.maximumf %5, %6 : vector<8x64xf32>
    %c0_6 = arith.constant 0 : index
    %c0_7 = arith.constant 0 : index
    %8 = vector.load %arg3[%c0_6, %c0_7] : memref<64x32xf32, #tpu.memory_space<vmem>>, vector<64x32xf32>
    %cst_8 = arith.constant dense<0.000000e+00> : vector<8x32xf32>
    %9 = tpu.matmul %7, %8, %cst_8 {dimension_numbers = #tpu.dot_dimension_numbers<[1], [0], [0], [1], [0, 0, 1, 1], [], []>} : vector<8x64xf32>, vector<64x32xf32>, vector<8x32xf32> -> vector<8x32xf32>
    %c0_9 = arith.constant 0 : index
    %c0_10 = arith.constant 0 : index
    %10 = vector.load %arg4[%c0_9, %c0_10] : memref<1x32xf32, #tpu.memory_space<vmem>>, vector<1x32xf32>
    %11 = vector.broadcast %10 : vector<1x32xf32> to vector<8x32xf32>
    %12 = arith.addf %9, %11 : vector<8x32xf32>
    %c0_11 = arith.constant 0 : index
    %c0_12 = arith.constant 0 : index
    %13 = vector.load %arg5[%c0_11, %c0_12] : memref<32x24xf32, #tpu.memory_space<vmem>>, vector<32x24xf32>
    %cst_13 = arith.constant dense<0.000000e+00> : vector<8x24xf32>
    %14 = tpu.matmul %12, %13, %cst_13 {dimension_numbers = #tpu.dot_dimension_numbers<[1], [0], [0], [1], [0, 0, 1, 1], [], []>} : vector<8x32xf32>, vector<32x24xf32>, vector<8x24xf32> -> vector<8x24xf32>
    %c0_14 = arith.constant 0 : index
    %c0_15 = arith.constant 0 : index
    %15 = vector.load %arg6[%c0_14, %c0_15] : memref<1x24xf32, #tpu.memory_space<vmem>>, vector<1x24xf32>
    %16 = vector.broadcast %15 : vector<1x24xf32> to vector<8x24xf32>
    %17 = arith.addf %14, %16 : vector<8x24xf32>
    %cst_16 = arith.constant 0.000000e+00 : f32
    %18 = vector.broadcast %cst_16 : f32 to vector<8x24xf32>
    %19 = arith.maximumf %17, %18 : vector<8x24xf32>
    %c0_17 = arith.constant 0 : index
    %c0_18 = arith.constant 0 : index
    %20 = vector.load %arg7[%c0_17, %c0_18] : memref<24x128xf32, #tpu.memory_space<vmem>>, vector<24x128xf32>
    %cst_19 = arith.constant dense<0.000000e+00> : vector<8x128xf32>
    %21 = tpu.matmul %19, %20, %cst_19 {dimension_numbers = #tpu.dot_dimension_numbers<[1], [0], [0], [1], [0, 0, 1, 1], [], []>} : vector<8x24xf32>, vector<24x128xf32>, vector<8x128xf32> -> vector<8x128xf32>
    %c0_20 = arith.constant 0 : index
    %c0_21 = arith.constant 0 : index
    %22 = vector.load %arg8[%c0_20, %c0_21] : memref<1x128xf32, #tpu.memory_space<vmem>>, vector<1x128xf32>
    %23 = vector.broadcast %22 : vector<1x128xf32> to vector<8x128xf32>
    %24 = arith.addf %21, %23 : vector<8x128xf32>
    %c0_22 = arith.constant 0 : index
    %c0_23 = arith.constant 0 : index
    %25 = vector.load %arg9[%c0_22, %c0_23] : memref<8x128xf32, #tpu.memory_space<vmem>>, vector<8x128xf32>
    tpu.vector_store %arg9[%c0_22, %c0_23], %24 {strides = array<i32>} : memref<8x128xf32, #tpu.memory_space<vmem>>, vector<8x128xf32>,
    return
  }
}

</mosaic_0001>

<llo_original>
// kernel: tpu_custom_call.1
$region0: #{tpu_custom_call.1}
  #allocation0 [shape = 'u32[]', space=smem, size = 0x4, offset = 0x4, fixed_abs, tag = 'smem constant byte address 0x4 - core index']
  #allocation1 [shape = 'u32[72,128]{1,0:T(1,128)}', space=vmem, size = 0x9000, scoped, tag = 'internal scratch']
  %s0 = inlined_call_operand.vmem [shape: f32[8,32], index: 0, kind: input, shape index: {}]
  %s1 = inlined_call_operand.vmem [shape: f32[32,64], index: 1, kind: input, shape index: {}]
  %s2 = inlined_call_operand.vmem [shape: f32[1,64], index: 2, kind: input, shape index: {}]
  %s3 = inlined_call_operand.vmem [shape: f32[64,32], index: 3, kind: input, shape index: {}]
  %s4 = inlined_call_operand.vmem [shape: f32[1,32], index: 4, kind: input, shape index: {}]
  %s5 = inlined_call_operand.vmem [shape: f32[32,24], index: 5, kind: input, shape index: {}]
  %s6 = inlined_call_operand.vmem [shape: f32[1,24], index: 6, kind: input, shape index: {}]
  %s7 = inlined_call_operand.vmem [shape: f32[24,128], index: 7, kind: input, shape index: {}]
  %s8 = inlined_call_operand.vmem [shape: f32[1,128], index: 8, kind: input, shape index: {}]
  %s9 = inlined_call_operand.hbm [shape: f32[8,128], index: 9, kind: output, shape index: {}]
  %s10 = sld [smem:[#allocation0]]
  $region46: #{tpu_custom_call.1} parent=0
    _
  %s12 = ssub.s32 1, %s10
  %s13 = scalar_select 0, %s12, %s10
  $region1: #{tpu_custom_call.1} parent=0
    #allocation2 [shape = 'u8[4096]{0}', space=vmem, size = 0x1000, scoped, tag = 'output window, operand 0, single buffered']
    #allocation3 [shape = 's32[1]{0}', space=sflag, size = 0x4, scoped, tag = 'scoped memory for tpu_custom_call.1']
    %14 = vsyncpa [#allocation3], 0
    // Predicated region
    $region2: #{tpu_custom_call.1} parent=1 // pred_check
      _
    $region3: #{tpu_custom_call.1} parent=1 // pred_check_branch
      %16 = sbr.rel (0) target = $region5
    $region4: #{tpu_custom_call.1} parent=1 // pred_region
      _
    $region5: #{tpu_custom_call.1} parent=1 // pred_fallthru
      _
    // Predicated region
    $region6: #{tpu_custom_call.1} parent=1 // pred_check
      _
    $region7: #{tpu_custom_call.1} parent=1 // pred_check_branch
      %18 = sbr.rel (0) target = $region9
    $region8: #{tpu_custom_call.1} parent=1 // pred_region
      _
    $region9: #{tpu_custom_call.1} parent=1 // pred_fallthru
      _
    // Predicated region
    $region10: #{tpu_custom_call.1} parent=1 // pred_check
      _
    $region11: #{tpu_custom_call.1} parent=1 // pred_check_branch
      %20 = sbr.rel (0) target = $region13
    $region12: #{tpu_custom_call.1} parent=1 // pred_region
      _
    $region13: #{tpu_custom_call.1} parent=1 // pred_fallthru
      _
    // Predicated region
    $region14: #{tpu_custom_call.1} parent=1 // pred_check
      _
    $region15: #{tpu_custom_call.1} parent=1 // pred_check_branch
      %22 = sbr.rel (0) target = $region17
    $region16: #{tpu_custom_call.1} parent=1 // pred_region
      _
    $region17: #{tpu_custom_call.1} parent=1 // pred_fallthru
      _
    // Predicated region
    $region18: #{tpu_custom_call.1} parent=1 // pred_check
      _
    $region19: #{tpu_custom_call.1} parent=1 // pred_check_branch
      %24 = sbr.rel (0) target = $region21
    $region20: #{tpu_custom_call.1} parent=1 // pred_region
      _
    $region21: #{tpu_custom_call.1} parent=1 // pred_fallthru
      _
    // Predicated region
    $region22: #{tpu_custom_call.1} parent=1 // pred_check
      _
    $region23: #{tpu_custom_call.1} parent=1 // pred_check_branch
      %26 = sbr.rel (0) target = $region25
    $region24: #{tpu_custom_call.1} parent=1 // pred_region
      _
    $region25: #{tpu_custom_call.1} parent=1 // pred_fallthru
      _
    // Predicated region
    $region26: #{tpu_custom_call.1} parent=1 // pred_check
      _
    $region27: #{tpu_custom_call.1} parent=1 // pred_check_branch
      %28 = sbr.rel (0) target = $region29
    $region28: #{tpu_custom_call.1} parent=1 // pred_region
      _
    $region29: #{tpu_custom_call.1} parent=1 // pred_fallthru
      _
    // Predicated region
    $region30: #{tpu_custom_call.1} parent=1 // pred_check
      _
    $region31: #{tpu_custom_call.1} parent=1 // pred_check_branch
      %30 = sbr.rel (0) target = $region33
    $region32: #{tpu_custom_call.1} parent=1 // pred_region
      _
    $region33: #{tpu_custom_call.1} parent=1 // pred_fallthru
      _
    // Predicated region
    $region34: #{tpu_custom_call.1} parent=1 // pred_check
      _
    $region35: #{tpu_custom_call.1} parent=1 // pred_check_branch
      %32 = sbr.rel (0) target = $region37
    $region36: #{tpu_custom_call.1} parent=1 // pred_region
      _
    $region37: #{tpu_custom_call.1} parent=1 // pred_fallthru
      _
    %v33 = vld [vmem:[%s0] sm:$0xff]
    %v34 = vld [vmem:[%s1] sm:$0xff]
    %v35 = vld [vmem:[%s1 + $0x8] sm:$0xff]
    %v36 = vld [vmem:[%s1 + $0x10] sm:$0xff]
    %v37 = vld [vmem:[%s1 + $0x18] sm:$0xff]
    %v38 = vld [vmem:[%s2] sm:$0x1]
    %v40 = vperm.slane %v38, 0
    %vm42 = vcmask 261120
    %v44 = vsel %vm42, %v33, 0
    %46 = vmatpush.msra.mxu0 0.0
    %47 = vmatpush.msra.mxu0 0.0
    %48 = vmatpush.msra.mxu0 0.0
    %49 = vmatpush.msra.mxu0 0.0
    %50 = vmatpush.msra.mxu0 0.0
    %51 = vmatpush.msra.mxu0 0.0
    %52 = vmatpush.msra.mxu0 0.0
    %53 = vmatpush.msra.mxu0 0.0
    %54 = vmatpush.msra.mxu0 0.0
    %55 = vmatpush.msra.mxu0 0.0
    %56 = vmatpush.msra.mxu0 0.0
    %57 = vmatpush.msra.mxu0 0.0
    %58 = vmatpush.msra.mxu0 %v37
    %59 = vmatpush.msra.mxu0 %v36
    %60 = vmatpush.msra.mxu0 %v35
    %61 = vmatpush.msra.mxu0 %v34
    %62 = vmatmul.f32.gmra.mxu0 %v44
    %v63 = vpop.f32.mrf.mxu0
    %v64 = vadd.f32 %v40, %v63
    %65 = vdwg.mxu0
    %v66 = vmax.f32 %v64, 0.0
    %v67 = vld [vmem:[%s3] sm:$0xff]
    %v68 = vld [vmem:[%s3 + $0x8] sm:$0xff]
    %v69 = vld [vmem:[%s3 + $0x10] sm:$0xff]
    %v70 = vld [vmem:[%s3 + $0x18] sm:$0xff]
    %v71 = vld [vmem:[%s3 + $0x20] sm:$0xff]
    %v72 = vld [vmem:[%s3 + $0x28] sm:$0xff]
    %v73 = vld [vmem:[%s3 + $0x30] sm:$0xff]
    %v74 = vld [vmem:[%s3 + $0x38] sm:$0xff]
    %v75 = vld [vmem:[%s4] sm:$0x1]
    %v77 = vperm.slane %v75, 0
    %vm79 = vcmask 523264
    %v81 = vsel %vm79, %v66, 0
    %83 = vmatpush.msra.mxu0 0.0
    %84 = vmatpush.msra.mxu0 0.0
    %85 = vmatpush.msra.mxu0 0.0
    %86 = vmatpush.msra.mxu0 0.0
    %87 = vmatpush.msra.mxu0 0.0
    %88 = vmatpush.msra.mxu0 0.0
    %89 = vmatpush.msra.mxu0 0.0
    %90 = vmatpush.msra.mxu0 0.0
    %91 = vmatpush.msra.mxu0 %v74
    %92 = vmatpush.msra.mxu0 %v73
    %93 = vmatpush.msra.mxu0 %v72
    %94 = vmatpush.msra.mxu0 %v71
    %95 = vmatpush.msra.mxu0 %v70
    %96 = vmatpush.msra.mxu0 %v69
    %97 = vmatpush.msra.mxu0 %v68
    %98 = vmatpush.msra.mxu0 %v67
    %99 = vmatmul.f32.gmra.mxu0 %v81
    %v100 = vpop.f32.mrf.mxu0
    %v101 = vadd.f32 %v77, %v100
    %102 = vdwg.mxu0
    %v103 = vld [vmem:[%s5] sm:$0xff]
    %v104 = vld [vmem:[%s5 + $0x8] sm:$0xff]
    %v105 = vld [vmem:[%s5 + $0x10] sm:$0xff]
    %v106 = vld [vmem:[%s5 + $0x18] sm:$0xff]
    %v107 = vld [vmem:[%s6] sm:$0x1]
    %v109 = vperm.slane %v107, 0
    %v112 = vsel %vm42, %v101, 0
    %114 = vmatpush.msra.mxu0 0.0
    %115 = vmatpush.msra.mxu0 0.0
    %116 = vmatpush.msra.mxu0 0.0
    %117 = vmatpush.msra.mxu0 0.0
    %118 = vmatpush.msra.mxu0 0.0
    %119 = vmatpush.msra.mxu0 0.0
    %120 = vmatpush.msra.mxu0 0.0
    %121 = vmatpush.msra.mxu0 0.0
    %122 = vmatpush.msra.mxu0 0.0
    %123 = vmatpush.msra.mxu0 0.0
    %124 = vmatpush.msra.mxu0 0.0
    %125 = vmatpush.msra.mxu0 0.0
    %126 = vmatpush.msra.mxu0 %v106
    %127 = vmatpush.msra.mxu0 %v105
    %128 = vmatpush.msra.mxu0 %v104
    %129 = vmatpush.msra.mxu0 %v103
    %130 = vmatmul.f32.gmra.mxu0 %v112
    %v131 = vpop.f32.mrf.mxu0
    %v132 = vadd.f32 %v109, %v131
    %133 = vdwg.mxu0
    %v134 = vmax.f32 %v132, 0.0
    %v135 = vld [vmem:[%s7] sm:$0xff]
    %v136 = vld [vmem:[%s7 + $0x8] sm:$0xff]
    %v137 = vld [vmem:[%s7 + $0x10] sm:$0xff]
    %v138 = vld [vmem:[%s8] sm:$0x1]
    %v140 = vperm.slane %v138, 0
    %vm142 = vcmask 195584
    %v144 = vsel %vm142, %v134, 0
    %146 = vmatpush.msra.mxu0 0.0
    %147 = vmatpush.msra.mxu0 0.0
    %148 = vmatpush.msra.mxu0 0.0
    %149 = vmatpush.msra.mxu0 0.0
    %150 = vmatpush.msra.mxu0 0.0
    %151 = vmatpush.msra.mxu0 0.0
    %152 = vmatpush.msra.mxu0 0.0
    %153 = vmatpush.msra.mxu0 0.0
    %154 = vmatpush.msra.mxu0 0.0
    %155 = vmatpush.msra.mxu0 0.0
    %156 = vmatpush.msra.mxu0 0.0
    %157 = vmatpush.msra.mxu0 0.0
    %158 = vmatpush.msra.mxu0 0.0
    %159 = vmatpush.msra.mxu0 %v137
    %160 = vmatpush.msra.mxu0 %v136
    %161 = vmatpush.msra.mxu0 %v135
    %162 = vmatmul.f32.gmra.mxu0 %v144
    %v163 = vpop.f32.mrf.mxu0
    %v164 = vadd.f32 %v140, %v163
    %165 = vdwg.mxu0
    %166 = vst [vmem:[#allocation2] sm:$0xff] %v164
    // Predicated region
    $region38: #{tpu_custom_call.1} parent=1 // pred_check
      _
    $region39: #{tpu_custom_call.1} parent=1 // pred_check_branch
      %168 = sbr.rel (0) target = $region41
    $region40: #{tpu_custom_call.1} parent=1 // pred_region
      %170 = vsyncadd [#allocation3], 0
      %s172 = sshll.u32 [#allocation2], 4
      %s173 = int_to_ptr.vmem [resolvable:$true] %s172
      %s174 = sshll.u32 %s9, 4
      %s175 = int_to_ptr.hbm [resolvable:$true] %s174
      %177 = dma.vmem_to_hbm [thread:$0]  %s173, 128, %s175, [#allocation3]
    $region41: #{tpu_custom_call.1} parent=1 // pred_fallthru
      _
    // Predicated region
    $region42: #{tpu_custom_call.1} parent=1 // pred_check
      _
    $region43: #{tpu_custom_call.1} parent=1 // pred_check_branch
      %179 = sbr.rel (0) target = $region45
    $region44: #{tpu_custom_call.1} parent=1 // pred_region
      %181 = dma.done [#allocation3], 128
    $region45: #{tpu_custom_call.1} parent=1 // pred_fallthru
      _
    %182 = vsyncpa [#allocation3], 1

</llo_original>
